<compile_context>
chip_gen: v7x
topology: tpu7x:2x2x1
jax: 0.10.0
libtpu: 0.0.40
codegen_flags: <defaults>
</compile_context>

<pallas_src>
import functools

import numpy as np
import jax
import jax.numpy as jnp
from jax import lax
from jax.experimental import pallas as pl
from jax.experimental.pallas import tpu as pltpu

THRESHOLD = 1.0  # snn.Leaky default threshold


def _shapes(cfg, H, W):
    K = cfg["conv_kernel"]; sc = cfg["conv_stride"]; pk = cfg["maxpool2d_kernel"]
    OH1 = (H - K) // sc + 1
    OW1 = (W - K) // sc + 1
    PH1 = (OH1 - pk) // pk + 1
    PW1 = (OW1 - pk) // pk + 1
    OH2 = (PH1 - K) // sc + 1
    OW2 = (PW1 - K) // sc + 1
    PH2 = (OH2 - pk) // pk + 1
    PW2 = (OW2 - pk) // pk + 1
    return OH1, OW1, PH1, PW1, OH2, OW2, PH2, PW2


# ----------------------------- Pallas kernel -------------------------------

def _build_kernel(*, K, sc, pk, W, Cin, C1, C2, NOUT, PH2, PW2, thr=THRESHOLD):
    """Fused forward kernel specialized to the (static) shapes.

    All position bookkeeping is done on the flat input grid (lane = h*W + w),
    so each stage's access pattern is a set of static lane shifts:
      conv1 tap (kh,kw):            shift kh*W + kw
      pool1 offset (di,dj):         shift di*(sc*W) + dj*sc
      conv2 tap (kh,kw):            shift kh*(pk*sc*W) + kw*(pk*sc)
      pool2 offset (di,dj):         shift di*(sc*pk*sc*W) + dj*(sc*pk*sc)
      flatten position (ph2,pw2):   shift ph2*(pk^2*sc^2*W) + pw2*(pk^2*sc^2)
    """
    KK = K * K
    g1h, g1w = sc * W, sc            # conv1 output grid lane strides
    g2h, g2w = pk * g1h, pk * g1w    # pool1 output grid
    g3h, g3w = sc * g2h, sc * g2w    # conv2 output grid
    g4h, g4w = pk * g3h, pk * g3w    # pool2 output grid

    conv1_shifts = [kh * W + kw for kh in range(K) for kw in range(K)]
    pool1_shifts = [di * g1h + dj * g1w for di in range(pk) for dj in range(pk)]
    conv2_shifts = [kh * g2h + kw * g2w for kh in range(K) for kw in range(K)]
    pool2_shifts = [di * g3h + dj * g3w for di in range(pk) for dj in range(pk)]
    flat_shifts = [p * g4h + q * g4w for p in range(PH2) for q in range(PW2)]

    def shift(v, s):
        # out[:, i] = v[:, i + s]  (zero fill past the end); static s.
        if s == 0:
            return v
        pad = jnp.zeros((v.shape[0], s), v.dtype)
        return jnp.concatenate([v[:, s:], pad], axis=1)

    def kernel(x_ref, w1_ref, b1_ref, w2_ref, b2_ref, wfc_ref, bfc_ref, mem_ref):
        x = x_ref[...]                                            # (Cin, NLb)

        # ---- conv1: ONE lane-dense matmul, K = KK*Cin ----------------------
        xsh = jnp.concatenate([shift(x, s) for s in conv1_shifts], axis=0)
        cur1 = jnp.dot(w1_ref[...], xsh,
                       preferred_element_type=jnp.float32)        # (C1, NLb)
        # MaxPool2d as max over shifted copies; conv bias hoisted out (exact).
        m1 = functools.reduce(jnp.maximum,
                              [shift(cur1, s) for s in pool1_shifts])
        # Leaky from freshly reset (zero) membrane: mem = cur, spk = cur > thr.
        spk1 = ((m1 + b1_ref[...]) > thr).astype(jnp.float32)     # (C1, NLb)
        # TODO(synk): dropout1 (train-mode RNG) applied as identity (eval).

        # ---- conv2: ONE matmul, K = KK*C1 ----------------------------------
        sk2 = jnp.concatenate([shift(spk1, s) for s in conv2_shifts], axis=0)
        cur2 = jnp.dot(w2_ref[...], sk2,
                       preferred_element_type=jnp.float32)        # (C2, NLb)
        m2 = functools.reduce(jnp.maximum,
                              [shift(cur2, s) for s in pool2_shifts])
        spk2 = ((m2 + b2_ref[...]) > thr).astype(jnp.float32)     # (C2, NLb)
        # TODO(synk): dropout2 (train-mode RNG) applied as identity (eval).

        # ---- flatten + fc1: ONE matmul, K = S2*C2 --------------------------
        sf = jnp.concatenate([shift(spk2, s) for s in flat_shifts], axis=0)
        mem_ref[...] = (jnp.dot(wfc_ref[...], sf,
                                preferred_element_type=jnp.float32)
                        + bfc_ref[...])                           # (NOUT, NLb)
        # Valid fc1 result for image segment b sits at lane b*H*W; the wrapper
        # extracts it and computes spk_fc1 = (mem > thr) (review: drop spk
        # output / keep the store lane-dense and unmasked).

    return kernel


# ------------------------------ forward pass --------------------------------

def topology_net_forward(x, params, cfg, *, batch_block=1):
    """Replicates TopologyNet.forward(x) with freshly reset membranes."""
    K = cfg["conv_kernel"]; sc = cfg["conv_stride"]; pk = cfg["maxpool2d_kernel"]
    C1 = cfg["conv1_output_dim"]; C2 = cfg["conv2_output_dim"]
    B, Cin, H, W = x.shape
    _, _, _, _, _, _, PH2, PW2 = _shapes(cfg, H, W)

    KK = K * K
    S2 = PH2 * PW2
    NL = H * W                              # lanes per image segment
    NOUT = params["w_fc1"].shape[0]
    Bc = batch_block
    assert B % Bc == 0, "batch must be divisible by batch_block"
    NLb = Bc * NL

    # ---- host prep: one transpose/reshape per tensor (no im2col, no gather
    # constants; everything else happens inside the single pallas_call) -------
    x_arr = jnp.transpose(x, (1, 0, 2, 3)).reshape(Cin, B * NL)
    w1 = params["w_conv1"].transpose(0, 2, 3, 1).reshape(C1, KK * Cin)
    b1 = params["b_conv1"][:, None]
    w2 = params["w_conv2"].transpose(0, 2, 3, 1).reshape(C2, KK * C1)
    b2 = params["b_conv2"][:, None]
    wfc = (params["w_fc1"].reshape(NOUT, C2, S2)
           .transpose(0, 2, 1).reshape(NOUT, S2 * C2))
    bfc = params["b_fc1"][:, None]
    # beta_conv1 / beta_conv2 / beta_fc1 are inert for a single step from a
    # freshly reset (zero) membrane, so they are not consumed (exact).

    kernel = _build_kernel(K=K, sc=sc, pk=pk, W=W, Cin=Cin, C1=C1, C2=C2,
                           NOUT=NOUT, PH2=PH2, PW2=PW2)

    grid = (B // Bc,)
    const = lambda i: (0, 0)                # weights stay VMEM-resident

    flops = 2 * B * NL * (C1 * KK * Cin + C2 * KK * C1 + NOUT * S2 * C2)
    bytes_accessed = 4 * (Cin * B * NL + NOUT * B * NL
                          + w1.size + w2.size + wfc.size + C1 + C2 + NOUT)

    mem_full = pl.pallas_call(
        kernel,
        grid=grid,
        out_shape=jax.ShapeDtypeStruct((NOUT, B * NL), jnp.float32),
        in_specs=[
            pl.BlockSpec((Cin, NLb), lambda i: (0, i)),
            pl.BlockSpec((C1, KK * Cin), const),
            pl.BlockSpec((C1, 1), const),
            pl.BlockSpec((C2, KK * C1), const),
            pl.BlockSpec((C2, 1), const),
            pl.BlockSpec((NOUT, S2 * C2), const),
            pl.BlockSpec((NOUT, 1), const),
        ],
        out_specs=pl.BlockSpec((NOUT, NLb), lambda i: (0, i)),
        compiler_params=pltpu.CompilerParams(
            dimension_semantics=("parallel",),      # megacore / 2-TC on v7x
            vmem_limit_bytes=32 * 1024 * 1024),     # explicit, fits v7x budget
        cost_estimate=pl.CostEstimate(flops=flops, transcendentals=0,
                                      bytes_accessed=bytes_accessed),
    )(x_arr, w1, b1, w2, b2, wfc, bfc)

    # Lane 0 of every image segment holds the fc1 membrane; slice + transpose
    # in the wrapper, spike computed here (kernel output stays lane-dense).
    mem = mem_full.reshape(NOUT, B, NL)[:, :, 0].T          # (B, NOUT)
    spk = (mem > THRESHOLD).astype(jnp.float32)
    return spk, mem


# --------------------------- pure-JAX reference ------------------------------

def reference_forward(x, params, cfg):
    K = cfg["conv_kernel"]; sc = cfg["conv_stride"]; pk = cfg["maxpool2d_kernel"]

    def conv(inp, w, b):
        y = lax.conv_general_dilated(inp, w, (sc, sc), "VALID",
                                     dimension_numbers=("NCHW", "OIHW", "NCHW"))
        return y + b[None, :, None, None]

    def maxpool(y):
        return lax.reduce_window(y, -jnp.inf, lax.max,
                                 (1, 1, pk, pk), (1, 1, pk, pk), "VALID")

    def lif(cur):  # mem_prev = 0 (fresh reset)
        return (cur > THRESHOLD).astype(jnp.float32), cur

    spk1, _ = lif(maxpool(conv(x, params["w_conv1"], params["b_conv1"])))
    spk2, _ = lif(maxpool(conv(spk1, params["w_conv2"], params["b_conv2"])))
    flat = spk2.reshape(spk2.shape[0], -1)
    cur_fc = flat @ params["w_fc1"].T + params["b_fc1"][None, :]
    return lif(cur_fc)


# ------------------------------- main ---------------------------------------

if __name__ == "__main__":
    # Synthetic cfg (mirrors cfg.topology_net / cfg.preprocess_vision):
    cfg = dict(
        conv1_output_dim=4,
        conv2_output_dim=8,
        conv_kernel=3,
        conv_stride=1,
        maxpool2d_kernel=2,
        num_outputs=2 * 4 * 2,   # pos_xz.num_outputs * pop_code * rate_pop_code
    )
    H = W = 16          # event_frame_shape
    B = 2               # batch
    Cin = 2             # event polarity channels (fixed by nn.Conv2d(2, ...))
    K = cfg["conv_kernel"]
    C1, C2 = cfg["conv1_output_dim"], cfg["conv2_output_dim"]
    NOUT = cfg["num_outputs"]

    _, _, PH1, PW1, _, _, PH2, PW2 = _shapes(cfg, H, W)
    num_secondconv = C2 * PH2 * PW2

    key = jax.random.PRNGKey(0)
    ks = jax.random.split(key, 10)
    params = {
        "w_conv1": jax.random.normal(ks[0], (C1, Cin, K, K), jnp.float32) * 0.5,
        "b_conv1": jax.random.normal(ks[1], (C1,), jnp.float32) * 0.1,
        "w_conv2": jax.random.normal(ks[2], (C2, C1, K, K), jnp.float32) * 0.5,
        "b_conv2": jax.random.normal(ks[3], (C2,), jnp.float32) * 0.1,
        "w_fc1":   jax.random.normal(ks[4], (NOUT, num_secondconv), jnp.float32) * 0.5,
        "b_fc1":   jax.random.normal(ks[5], (NOUT,), jnp.float32) * 0.1,
        # Learned LIF params exist in the module but are inert for a single
        # forward from a freshly reset (zero) membrane:
        "beta_conv1": jax.random.uniform(ks[6], (PW1,), jnp.float32),
        "beta_conv2": jax.random.uniform(ks[7], (PW2,), jnp.float32),
        "beta_fc1":   jax.random.uniform(ks[8], (NOUT,), jnp.float32),
        # threshold_fc4 / beta_fc4 exist in __init__ but are unused in forward.
    }

    x = jax.random.uniform(ks[9], (B, Cin, H, W), jnp.float32) * 2.0

    fwd = jax.jit(functools.partial(topology_net_forward, cfg=cfg))
    spk_fc1, mem_fc1 = fwd(x, params)
    jax.block_until_ready((spk_fc1, mem_fc1))
    assert spk_fc1.shape == (B, NOUT) and mem_fc1.shape == (B, NOUT)

    # correctness check against a plain-JAX reference
    ref_spk, ref_mem = reference_forward(x, params, cfg)
    assert np.allclose(np.asarray(mem_fc1), np.asarray(ref_mem),
                       rtol=1e-3, atol=1e-3)
    assert np.allclose(np.asarray(spk_fc1), np.asarray(ref_spk),
                       rtol=1e-3, atol=1e-3)

    print("KERNEL_OK")
</pallas_src>

<mosaic_0001>
module attributes {stable_mosaic.version = 11 : i64} {
  func.func @kernel(%arg0: i32, %arg1: memref<2x256xf32, #tpu.memory_space<vmem>>, %arg2: memref<4x18xf32, #tpu.memory_space<vmem>>, %arg3: memref<4x1xf32, #tpu.memory_space<vmem>>, %arg4: memref<8x36xf32, #tpu.memory_space<vmem>>, %arg5: memref<8x1xf32, #tpu.memory_space<vmem>>, %arg6: memref<16x32xf32, #tpu.memory_space<vmem>>, %arg7: memref<16x1xf32, #tpu.memory_space<vmem>>, %arg8: memref<16x256xf32, #tpu.memory_space<vmem>>) attributes {dimension_semantics = [#tpu.dimension_semantics<parallel>], iteration_bounds = array<i64: 2>, scalar_prefetch = 0 : i64, scratch_operands = 0 : i64, tpu.core_type = #tpu.core_type<tc>, window_params = [{transform_indices = @transform_0, window_bounds = array<i64: 2, 256>}, {pipeline_mode = #tpu.pipeline_mode<synchronous>, transform_indices = @transform_1, window_bounds = array<i64: 4, 18>}, {pipeline_mode = #tpu.pipeline_mode<synchronous>, transform_indices = @transform_2, window_bounds = array<i64: 4, 1>}, {pipeline_mode = #tpu.pipeline_mode<synchronous>, transform_indices = @transform_3, window_bounds = array<i64: 8, 36>}, {pipeline_mode = #tpu.pipeline_mode<synchronous>, transform_indices = @transform_4, window_bounds = array<i64: 8, 1>}, {pipeline_mode = #tpu.pipeline_mode<synchronous>, transform_indices = @transform_5, window_bounds = array<i64: 16, 32>}, {pipeline_mode = #tpu.pipeline_mode<synchronous>, transform_indices = @transform_6, window_bounds = array<i64: 16, 1>}, {transform_indices = @transform_7, window_bounds = array<i64: 16, 256>}]} {
    %c0 = arith.constant 0 : index
    %c0_0 = arith.constant 0 : index
    %0 = vector.load %arg1[%c0, %c0_0] : memref<2x256xf32, #tpu.memory_space<vmem>>, vector<2x256xf32>
    %cst = arith.constant 0.000000e+00 : f32
    %1 = vector.broadcast %cst : f32 to vector<2x1xf32>
    %2 = vector.extract_strided_slice %0 {offsets = [0, 1], sizes = [2, 255], strides = [1, 1]} : vector<2x256xf32> to vector<2x255xf32>
    %3 = tpu.concatenate %2, %1 in 1 : vector<2x255xf32>, vector<2x1xf32> -> vector<2x256xf32>
    %cst_1 = arith.constant 0.000000e+00 : f32
    %4 = vector.broadcast %cst_1 : f32 to vector<2x2xf32>
    %5 = vector.extract_strided_slice %0 {offsets = [0, 2], sizes = [2, 254], strides = [1, 1]} : vector<2x256xf32> to vector<2x254xf32>
    %6 = tpu.concatenate %5, %4 in 1 : vector<2x254xf32>, vector<2x2xf32> -> vector<2x256xf32>
    %cst_2 = arith.constant 0.000000e+00 : f32
    %7 = vector.broadcast %cst_2 : f32 to vector<2x16xf32>
    %8 = vector.extract_strided_slice %0 {offsets = [0, 16], sizes = [2, 240], strides = [1, 1]} : vector<2x256xf32> to vector<2x240xf32>
    %9 = tpu.concatenate %8, %7 in 1 : vector<2x240xf32>, vector<2x16xf32> -> vector<2x256xf32>
    %cst_3 = arith.constant 0.000000e+00 : f32
    %10 = vector.broadcast %cst_3 : f32 to vector<2x17xf32>
    %11 = vector.extract_strided_slice %0 {offsets = [0, 17], sizes = [2, 239], strides = [1, 1]} : vector<2x256xf32> to vector<2x239xf32>
    %12 = tpu.concatenate %11, %10 in 1 : vector<2x239xf32>, vector<2x17xf32> -> vector<2x256xf32>
    %cst_4 = arith.constant 0.000000e+00 : f32
    %13 = vector.broadcast %cst_4 : f32 to vector<2x18xf32>
    %14 = vector.extract_strided_slice %0 {offsets = [0, 18], sizes = [2, 238], strides = [1, 1]} : vector<2x256xf32> to vector<2x238xf32>
    %15 = tpu.concatenate %14, %13 in 1 : vector<2x238xf32>, vector<2x18xf32> -> vector<2x256xf32>
    %cst_5 = arith.constant 0.000000e+00 : f32
    %16 = vector.broadcast %cst_5 : f32 to vector<2x32xf32>
    %17 = vector.extract_strided_slice %0 {offsets = [0, 32], sizes = [2, 224], strides = [1, 1]} : vector<2x256xf32> to vector<2x224xf32>
    %18 = tpu.concatenate %17, %16 in 1 : vector<2x224xf32>, vector<2x32xf32> -> vector<2x256xf32>
    %cst_6 = arith.constant 0.000000e+00 : f32
    %19 = vector.broadcast %cst_6 : f32 to vector<2x33xf32>
    %20 = vector.extract_strided_slice %0 {offsets = [0, 33], sizes = [2, 223], strides = [1, 1]} : vector<2x256xf32> to vector<2x223xf32>
    %21 = tpu.concatenate %20, %19 in 1 : vector<2x223xf32>, vector<2x33xf32> -> vector<2x256xf32>
    %cst_7 = arith.constant 0.000000e+00 : f32
    %22 = vector.broadcast %cst_7 : f32 to vector<2x34xf32>
    %23 = vector.extract_strided_slice %0 {offsets = [0, 34], sizes = [2, 222], strides = [1, 1]} : vector<2x256xf32> to vector<2x222xf32>
    %24 = tpu.concatenate %23, %22 in 1 : vector<2x222xf32>, vector<2x34xf32> -> vector<2x256xf32>
    %25 = tpu.concatenate %0, %3, %6, %9, %12, %15, %18, %21, %24 in 0 : vector<2x256xf32>, vector<2x256xf32>, vector<2x256xf32>, vector<2x256xf32>, vector<2x256xf32>, vector<2x256xf32>, vector<2x256xf32>, vector<2x256xf32>, vector<2x256xf32> -> vector<18x256xf32>
    %c0_8 = arith.constant 0 : index
    %c0_9 = arith.constant 0 : index
    %26 = vector.load %arg2[%c0_8, %c0_9] : memref<4x18xf32, #tpu.memory_space<vmem>>, vector<4x18xf32>
    %cst_10 = arith.constant dense<0.000000e+00> : vector<4x256xf32>
    %27 = tpu.matmul %26, %25, %cst_10 {dimension_numbers = #tpu.dot_dimension_numbers<[1], [0], [0], [1], [0, 0, 1, 1], [], []>} : vector<4x18xf32>, vector<18x256xf32>, vector<4x256xf32> -> vector<4x256xf32>
    %cst_11 = arith.constant 0.000000e+00 : f32
    %28 = vector.broadcast %cst_11 : f32 to vector<4x1xf32>
    %29 = vector.extract_strided_slice %27 {offsets = [0, 1], sizes = [4, 255], strides = [1, 1]} : vector<4x256xf32> to vector<4x255xf32>
    %30 = tpu.concatenate %29, %28 in 1 : vector<4x255xf32>, vector<4x1xf32> -> vector<4x256xf32>
    %cst_12 = arith.constant 0.000000e+00 : f32
    %31 = vector.broadcast %cst_12 : f32 to vector<4x16xf32>
    %32 = vector.extract_strided_slice %27 {offsets = [0, 16], sizes = [4, 240], strides = [1, 1]} : vector<4x256xf32> to vector<4x240xf32>
    %33 = tpu.concatenate %32, %31 in 1 : vector<4x240xf32>, vector<4x16xf32> -> vector<4x256xf32>
    %cst_13 = arith.constant 0.000000e+00 : f32
    %34 = vector.broadcast %cst_13 : f32 to vector<4x17xf32>
    %35 = vector.extract_strided_slice %27 {offsets = [0, 17], sizes = [4, 239], strides = [1, 1]} : vector<4x256xf32> to vector<4x239xf32>
    %36 = tpu.concatenate %35, %34 in 1 : vector<4x239xf32>, vector<4x17xf32> -> vector<4x256xf32>
    %37 = arith.maximumf %27, %30 : vector<4x256xf32>
    %38 = arith.maximumf %37, %33 : vector<4x256xf32>
    %39 = arith.maximumf %38, %36 : vector<4x256xf32>
    %c0_14 = arith.constant 0 : index
    %c0_15 = arith.constant 0 : index
    %40 = vector.load %arg3[%c0_14, %c0_15] : memref<4x1xf32, #tpu.memory_space<vmem>>, vector<4x1xf32>
    %41 = vector.broadcast %40 : vector<4x1xf32> to vector<4x256xf32>
    %42 = arith.addf %39, %41 : vector<4x256xf32>
    %cst_16 = arith.constant 1.000000e+00 : f32
    %43 = vector.broadcast %cst_16 : f32 to vector<4x256xf32>
    %44 = arith.cmpf ogt, %42, %43 : vector<4x256xf32>
    %45 = arith.extui %44 : vector<4x256xi1> to vector<4x256xi32>
    %46 = arith.sitofp %45 : vector<4x256xi32> to vector<4x256xf32>
    %cst_17 = arith.constant 0.000000e+00 : f32
    %47 = vector.broadcast %cst_17 : f32 to vector<4x2xf32>
    %48 = vector.extract_strided_slice %46 {offsets = [0, 2], sizes = [4, 254], strides = [1, 1]} : vector<4x256xf32> to vector<4x254xf32>
    %49 = tpu.concatenate %48, %47 in 1 : vector<4x254xf32>, vector<4x2xf32> -> vector<4x256xf32>
    %cst_18 = arith.constant 0.000000e+00 : f32
    %50 = vector.broadcast %cst_18 : f32 to vector<4x4xf32>
    %51 = vector.extract_strided_slice %46 {offsets = [0, 4], sizes = [4, 252], strides = [1, 1]} : vector<4x256xf32> to vector<4x252xf32>
    %52 = tpu.concatenate %51, %50 in 1 : vector<4x252xf32>, vector<4x4xf32> -> vector<4x256xf32>
    %cst_19 = arith.constant 0.000000e+00 : f32
    %53 = vector.broadcast %cst_19 : f32 to vector<4x32xf32>
    %54 = vector.extract_strided_slice %46 {offsets = [0, 32], sizes = [4, 224], strides = [1, 1]} : vector<4x256xf32> to vector<4x224xf32>
    %55 = tpu.concatenate %54, %53 in 1 : vector<4x224xf32>, vector<4x32xf32> -> vector<4x256xf32>
    %cst_20 = arith.constant 0.000000e+00 : f32
    %56 = vector.broadcast %cst_20 : f32 to vector<4x34xf32>
    %57 = vector.extract_strided_slice %46 {offsets = [0, 34], sizes = [4, 222], strides = [1, 1]} : vector<4x256xf32> to vector<4x222xf32>
    %58 = tpu.concatenate %57, %56 in 1 : vector<4x222xf32>, vector<4x34xf32> -> vector<4x256xf32>
    %cst_21 = arith.constant 0.000000e+00 : f32
    %59 = vector.broadcast %cst_21 : f32 to vector<4x36xf32>
    %60 = vector.extract_strided_slice %46 {offsets = [0, 36], sizes = [4, 220], strides = [1, 1]} : vector<4x256xf32> to vector<4x220xf32>
    %61 = tpu.concatenate %60, %59 in 1 : vector<4x220xf32>, vector<4x36xf32> -> vector<4x256xf32>
    %cst_22 = arith.constant 0.000000e+00 : f32
    %62 = vector.broadcast %cst_22 : f32 to vector<4x64xf32>
    %63 = vector.extract_strided_slice %46 {offsets = [0, 64], sizes = [4, 192], strides = [1, 1]} : vector<4x256xf32> to vector<4x192xf32>
    %64 = tpu.concatenate %63, %62 in 1 : vector<4x192xf32>, vector<4x64xf32> -> vector<4x256xf32>
    %cst_23 = arith.constant 0.000000e+00 : f32
    %65 = vector.broadcast %cst_23 : f32 to vector<4x66xf32>
    %66 = vector.extract_strided_slice %46 {offsets = [0, 66], sizes = [4, 190], strides = [1, 1]} : vector<4x256xf32> to vector<4x190xf32>
    %67 = tpu.concatenate %66, %65 in 1 : vector<4x190xf32>, vector<4x66xf32> -> vector<4x256xf32>
    %cst_24 = arith.constant 0.000000e+00 : f32
    %68 = vector.broadcast %cst_24 : f32 to vector<4x68xf32>
    %69 = vector.extract_strided_slice %46 {offsets = [0, 68], sizes = [4, 188], strides = [1, 1]} : vector<4x256xf32> to vector<4x188xf32>
    %70 = tpu.concatenate %69, %68 in 1 : vector<4x188xf32>, vector<4x68xf32> -> vector<4x256xf32>
    %71 = tpu.concatenate %46, %49, %52, %55, %58, %61, %64, %67, %70 in 0 : vector<4x256xf32>, vector<4x256xf32>, vector<4x256xf32>, vector<4x256xf32>, vector<4x256xf32>, vector<4x256xf32>, vector<4x256xf32>, vector<4x256xf32>, vector<4x256xf32> -> vector<36x256xf32>
    %c0_25 = arith.constant 0 : index
    %c0_26 = arith.constant 0 : index
    %72 = vector.load %arg4[%c0_25, %c0_26] : memref<8x36xf32, #tpu.memory_space<vmem>>, vector<8x36xf32>
    %cst_27 = arith.constant dense<0.000000e+00> : vector<8x256xf32>
    %73 = tpu.matmul %72, %71, %cst_27 {dimension_numbers = #tpu.dot_dimension_numbers<[1], [0], [0], [1], [0, 0, 1, 1], [], []>} : vector<8x36xf32>, vector<36x256xf32>, vector<8x256xf32> -> vector<8x256xf32>
    %cst_28 = arith.constant 0.000000e+00 : f32
    %74 = vector.broadcast %cst_28 : f32 to vector<8x2xf32>
    %75 = vector.extract_strided_slice %73 {offsets = [0, 2], sizes = [8, 254], strides = [1, 1]} : vector<8x256xf32> to vector<8x254xf32>
    %76 = tpu.concatenate %75, %74 in 1 : vector<8x254xf32>, vector<8x2xf32> -> vector<8x256xf32>
    %cst_29 = arith.constant 0.000000e+00 : f32
    %77 = vector.broadcast %cst_29 : f32 to vector<8x32xf32>
    %78 = vector.extract_strided_slice %73 {offsets = [0, 32], sizes = [8, 224], strides = [1, 1]} : vector<8x256xf32> to vector<8x224xf32>
    %79 = tpu.concatenate %78, %77 in 1 : vector<8x224xf32>, vector<8x32xf32> -> vector<8x256xf32>
    %cst_30 = arith.constant 0.000000e+00 : f32
    %80 = vector.broadcast %cst_30 : f32 to vector<8x34xf32>
    %81 = vector.extract_strided_slice %73 {offsets = [0, 34], sizes = [8, 222], strides = [1, 1]} : vector<8x256xf32> to vector<8x222xf32>
    %82 = tpu.concatenate %81, %80 in 1 : vector<8x222xf32>, vector<8x34xf32> -> vector<8x256xf32>
    %83 = arith.maximumf %73, %76 : vector<8x256xf32>
    %84 = arith.maximumf %83, %79 : vector<8x256xf32>
    %85 = arith.maximumf %84, %82 : vector<8x256xf32>
    %c0_31 = arith.constant 0 : index
    %c0_32 = arith.constant 0 : index
    %86 = vector.load %arg5[%c0_31, %c0_32] : memref<8x1xf32, #tpu.memory_space<vmem>>, vector<8x1xf32>
    %87 = vector.broadcast %86 : vector<8x1xf32> to vector<8x256xf32>
    %88 = arith.addf %85, %87 : vector<8x256xf32>
    %cst_33 = arith.constant 1.000000e+00 : f32
    %89 = vector.broadcast %cst_33 : f32 to vector<8x256xf32>
    %90 = arith.cmpf ogt, %88, %89 : vector<8x256xf32>
    %91 = arith.extui %90 : vector<8x256xi1> to vector<8x256xi32>
    %92 = arith.sitofp %91 : vector<8x256xi32> to vector<8x256xf32>
    %cst_34 = arith.constant 0.000000e+00 : f32
    %93 = vector.broadcast %cst_34 : f32 to vector<8x4xf32>
    %94 = vector.extract_strided_slice %92 {offsets = [0, 4], sizes = [8, 252], strides = [1, 1]} : vector<8x256xf32> to vector<8x252xf32>
    %95 = tpu.concatenate %94, %93 in 1 : vector<8x252xf32>, vector<8x4xf32> -> vector<8x256xf32>
    %cst_35 = arith.constant 0.000000e+00 : f32
    %96 = vector.broadcast %cst_35 : f32 to vector<8x64xf32>
    %97 = vector.extract_strided_slice %92 {offsets = [0, 64], sizes = [8, 192], strides = [1, 1]} : vector<8x256xf32> to vector<8x192xf32>
    %98 = tpu.concatenate %97, %96 in 1 : vector<8x192xf32>, vector<8x64xf32> -> vector<8x256xf32>
    %cst_36 = arith.constant 0.000000e+00 : f32
    %99 = vector.broadcast %cst_36 : f32 to vector<8x68xf32>
    %100 = vector.extract_strided_slice %92 {offsets = [0, 68], sizes = [8, 188], strides = [1, 1]} : vector<8x256xf32> to vector<8x188xf32>
    %101 = tpu.concatenate %100, %99 in 1 : vector<8x188xf32>, vector<8x68xf32> -> vector<8x256xf32>
    %102 = tpu.concatenate %92, %95, %98, %101 in 0 : vector<8x256xf32>, vector<8x256xf32>, vector<8x256xf32>, vector<8x256xf32> -> vector<32x256xf32>
    %c0_37 = arith.constant 0 : index
    %c0_38 = arith.constant 0 : index
    %103 = vector.load %arg6[%c0_37, %c0_38] : memref<16x32xf32, #tpu.memory_space<vmem>>, vector<16x32xf32>
    %cst_39 = arith.constant dense<0.000000e+00> : vector<16x256xf32>
    %104 = tpu.matmul %103, %102, %cst_39 {dimension_numbers = #tpu.dot_dimension_numbers<[1], [0], [0], [1], [0, 0, 1, 1], [], []>} : vector<16x32xf32>, vector<32x256xf32>, vector<16x256xf32> -> vector<16x256xf32>
    %c0_40 = arith.constant 0 : index
    %c0_41 = arith.constant 0 : index
    %105 = vector.load %arg7[%c0_40, %c0_41] : memref<16x1xf32, #tpu.memory_space<vmem>>, vector<16x1xf32>
    %106 = vector.broadcast %105 : vector<16x1xf32> to vector<16x256xf32>
    %107 = arith.addf %104, %106 : vector<16x256xf32>
    %c0_42 = arith.constant 0 : index
    %c0_43 = arith.constant 0 : index
    %108 = vector.load %arg8[%c0_42, %c0_43] : memref<16x256xf32, #tpu.memory_space<vmem>>, vector<16x256xf32>
    tpu.vector_store %arg8[%c0_42, %c0_43], %107 {strides = array<i32>} : memref<16x256xf32, #tpu.memory_space<vmem>>, vector<16x256xf32>,
    return
  }
  func.func @transform_0(%arg0: i32) -> (i32, i32) {
    %c0_i32 = arith.constant 0 : i32
    %c0_i32_0 = arith.constant 0 : i32
    return %c0_i32, %arg0 : i32, i32
  }
  func.func @transform_1(%arg0: i32) -> (i32, i32) {
    %c0_i32 = arith.constant 0 : i32
    %c0_i32_0 = arith.constant 0 : i32
    %c0_i32_1 = arith.constant 0 : i32
    return %c0_i32, %c0_i32_0 : i32, i32
  }
  func.func @transform_2(%arg0: i32) -> (i32, i32) {
    %c0_i32 = arith.constant 0 : i32
    %c0_i32_0 = arith.constant 0 : i32
    %c0_i32_1 = arith.constant 0 : i32
    return %c0_i32, %c0_i32_0 : i32, i32
  }
  func.func @transform_3(%arg0: i32) -> (i32, i32) {
    %c0_i32 = arith.constant 0 : i32
    %c0_i32_0 = arith.constant 0 : i32
    %c0_i32_1 = arith.constant 0 : i32
    return %c0_i32, %c0_i32_0 : i32, i32
  }
  func.func @transform_4(%arg0: i32) -> (i32, i32) {
    %c0_i32 = arith.constant 0 : i32
    %c0_i32_0 = arith.constant 0 : i32
    %c0_i32_1 = arith.constant 0 : i32
    return %c0_i32, %c0_i32_0 : i32, i32
  }
  func.func @transform_5(%arg0: i32) -> (i32, i32) {
    %c0_i32 = arith.constant 0 : i32
    %c0_i32_0 = arith.constant 0 : i32
    %c0_i32_1 = arith.constant 0 : i32
    return %c0_i32, %c0_i32_0 : i32, i32
  }
  func.func @transform_6(%arg0: i32) -> (i32, i32) {
    %c0_i32 = arith.constant 0 : i32
    %c0_i32_0 = arith.constant 0 : i32
    %c0_i32_1 = arith.constant 0 : i32
    return %c0_i32, %c0_i32_0 : i32, i32
  }
  func.func @transform_7(%arg0: i32) -> (i32, i32) {
    %c0_i32 = arith.constant 0 : i32
    %c0_i32_0 = arith.constant 0 : i32
    return %c0_i32, %arg0 : i32, i32
  }
}

</mosaic_0001>

<llo_original>
// kernel: topology_net_forward.1
$region0: #{topology_net_forward.1}
  #allocation0 [shape = 'u32[]', space=smem, size = 0x4, offset = 0x4, fixed_abs, tag = 'smem constant byte address 0x4 - core index']
  #allocation1 [shape = 'u32[144,128]{1,0:T(1,128)}', space=vmem, size = 0x12000, scoped, tag = 'internal scratch']
  %s0 = inlined_call_operand.vmem [shape: f32[2,512], index: 0, kind: input, shape index: {}]
  %s1 = inlined_call_operand.vmem [shape: f32[4,18], index: 1, kind: input, shape index: {}]
  %s2 = inlined_call_operand.vmem [shape: f32[4,1], index: 2, kind: input, shape index: {}]
  %s3 = inlined_call_operand.vmem [shape: f32[8,36], index: 3, kind: input, shape index: {}]
  %s4 = inlined_call_operand.vmem [shape: f32[8,1], index: 4, kind: input, shape index: {}]
  %s5 = inlined_call_operand.vmem [shape: f32[16,32], index: 5, kind: input, shape index: {}]
  %s6 = inlined_call_operand.vmem [shape: f32[16,1], index: 6, kind: input, shape index: {}]
  %s7 = inlined_call_operand.vmem [shape: f32[16,512], index: 7, kind: output, shape index: {}]
  %s8 = sld [smem:[#allocation0]]
  $region80: #{topology_net_forward.1} parent=0
    _
  %s10 = ssub.s32 1, %s8
  %s11 = scalar_select 0, %s10, %s8
  $region1: #{topology_net_forward.1} parent=0
    #allocation2 [shape = 'u8[32768]{0}', space=vmem, size = 0x8000, scoped, tag = 'output window, operand 0']
    loop: start=0, step=1, limit=4
    $region2: #{topology_net_forward.1} parent=1 // loop_pre_header
      _
    $region3: #{topology_net_forward.1} parent=1 // loop_header
      %s13 = sphi 0, %s17
      %p14 = scmp.ge.s32.totalorder %s13, 4
      %s23 = sphi 0, %s25
      %s26 = sphi 0, %s23
      %s27 = sphi 0, %s26
      %s43 = sphi 0, %s27
      %s47 = sphi 0, %s47
      %s49 = sphi 0, %s47
      %s50 = sphi 0, %s49
      %s64 = sphi 0, %s50
      %s68 = sphi 0, %s68
      %s70 = sphi 0, %s68
      %s71 = sphi 0, %s70
      %s85 = sphi 0, %s71
      %s89 = sphi 0, %s89
      %s91 = sphi 0, %s89
      %s92 = sphi 0, %s91
      %s106 = sphi 0, %s92
      %s110 = sphi 0, %s110
      %s112 = sphi 0, %s110
      %s113 = sphi 0, %s112
      %s127 = sphi 0, %s113
      %s131 = sphi 0, %s131
      %s133 = sphi 0, %s131
      %s134 = sphi 0, %s133
      %s148 = sphi 0, %s134
      %s152 = sphi 0, %s152
      %s154 = sphi 0, %s152
      %s155 = sphi 0, %s154
      %s169 = sphi 0, %s155
      %s175 = sphi 0, %s177
      %s178 = sphi 0, %s175
      %s179 = sphi 0, %s178
      %s195 = sphi 0, %s179
    $region4: #{topology_net_forward.1} parent=1 // loop_header_branch
      %16 = sbr.rel (%p14) target = $region8
    $region5: #{topology_net_forward.1} parent=1 // loop_body
      %s18 = ssub.s32 %s13, 1
      %s19 = ssub.s32 %s13, 2
      %s20 = sadd.s32 %s13, 1
      %s21 = ssub.s32 %s13, %s20
      %p22 = scmp.eq.s32.totalorder %s21, 0
      %s24 = sadd.s32 %s23, 1
      %s25 = scalar_select %p22, %s23, %s24
      %p28 = pneg %p22
      %p29 = scmp.eq.s32.totalorder %s13, 1
      %p30 = por %p28, %p29
      %p31 = scmp.ne.s32.totalorder %s23, %s26
      %p32 = scmp.eq.s32.totalorder %s13, 0
      %p33 = por %p31, %p32
      %p34 = scmp.ne.s32.totalorder %s23, %s26
      %p35 = scmp.eq.s32.totalorder %s18, 1
      %p36 = por %p34, %p35
      %p37 = scmp.ne.s32.totalorder %s26, %s27
      %p38 = scmp.eq.s32.totalorder %s18, 0
      %p39 = por %p37, %p38
      %p40 = scmp.ne.s32.totalorder %s26, %s27
      %p41 = scmp.eq.s32.totalorder %s19, 1
      %p42 = por %p40, %p41
      %p44 = scmp.ne.s32.totalorder %s27, %s43
      %p45 = scmp.eq.s32.totalorder %s19, 0
      %p46 = por %p44, %p45
      %s48 = sadd.s32 %s47, 1
      %p51 = scmp.eq.s32.totalorder %s13, 1
      %p52 = scmp.ne.s32.totalorder %s47, %s49
      %p53 = scmp.eq.s32.totalorder %s13, 0
      %p54 = por %p52, %p53
      %p55 = scmp.ne.s32.totalorder %s47, %s49
      %p56 = scmp.eq.s32.totalorder %s18, 1
      %p57 = por %p55, %p56
      %p58 = scmp.ne.s32.totalorder %s49, %s50
      %p59 = scmp.eq.s32.totalorder %s18, 0
      %p60 = por %p58, %p59
      %p61 = scmp.ne.s32.totalorder %s49, %s50
      %p62 = scmp.eq.s32.totalorder %s19, 1
      %p63 = por %p61, %p62
      %p65 = scmp.ne.s32.totalorder %s50, %s64
      %p66 = scmp.eq.s32.totalorder %s19, 0
      %p67 = por %p65, %p66
      %s69 = sadd.s32 %s68, 1
      %p72 = scmp.eq.s32.totalorder %s13, 1
      %p73 = scmp.ne.s32.totalorder %s68, %s70
      %p74 = scmp.eq.s32.totalorder %s13, 0
      %p75 = por %p73, %p74
      %p76 = scmp.ne.s32.totalorder %s68, %s70
      %p77 = scmp.eq.s32.totalorder %s18, 1
      %p78 = por %p76, %p77
      %p79 = scmp.ne.s32.totalorder %s70, %s71
      %p80 = scmp.eq.s32.totalorder %s18, 0
      %p81 = por %p79, %p80
      %p82 = scmp.ne.s32.totalorder %s70, %s71
      %p83 = scmp.eq.s32.totalorder %s19, 1
      %p84 = por %p82, %p83
      %p86 = scmp.ne.s32.totalorder %s71, %s85
      %p87 = scmp.eq.s32.totalorder %s19, 0
      %p88 = por %p86, %p87
      %s90 = sadd.s32 %s89, 1
      %p93 = scmp.eq.s32.totalorder %s13, 1
      %p94 = scmp.ne.s32.totalorder %s89, %s91
      %p95 = scmp.eq.s32.totalorder %s13, 0
      %p96 = por %p94, %p95
      %p97 = scmp.ne.s32.totalorder %s89, %s91
      %p98 = scmp.eq.s32.totalorder %s18, 1
      %p99 = por %p97, %p98
      %p100 = scmp.ne.s32.totalorder %s91, %s92
      %p101 = scmp.eq.s32.totalorder %s18, 0
      %p102 = por %p100, %p101
      %p103 = scmp.ne.s32.totalorder %s91, %s92
      %p104 = scmp.eq.s32.totalorder %s19, 1
      %p105 = por %p103, %p104
      %p107 = scmp.ne.s32.totalorder %s92, %s106
      %p108 = scmp.eq.s32.totalorder %s19, 0
      %p109 = por %p107, %p108
      %s111 = sadd.s32 %s110, 1
      %p114 = scmp.eq.s32.totalorder %s13, 1
      %p115 = scmp.ne.s32.totalorder %s110, %s112
      %p116 = scmp.eq.s32.totalorder %s13, 0
      %p117 = por %p115, %p116
      %p118 = scmp.ne.s32.totalorder %s110, %s112
      %p119 = scmp.eq.s32.totalorder %s18, 1
      %p120 = por %p118, %p119
      %p121 = scmp.ne.s32.totalorder %s112, %s113
      %p122 = scmp.eq.s32.totalorder %s18, 0
      %p123 = por %p121, %p122
      %p124 = scmp.ne.s32.totalorder %s112, %s113
      %p125 = scmp.eq.s32.totalorder %s19, 1
      %p126 = por %p124, %p125
      %p128 = scmp.ne.s32.totalorder %s113, %s127
      %p129 = scmp.eq.s32.totalorder %s19, 0
      %p130 = por %p128, %p129
      %s132 = sadd.s32 %s131, 1
      %p135 = scmp.eq.s32.totalorder %s13, 1
      %p136 = scmp.ne.s32.totalorder %s131, %s133
      %p137 = scmp.eq.s32.totalorder %s13, 0
      %p138 = por %p136, %p137
      %p139 = scmp.ne.s32.totalorder %s131, %s133
      %p140 = scmp.eq.s32.totalorder %s18, 1
      %p141 = por %p139, %p140
      %p142 = scmp.ne.s32.totalorder %s133, %s134
      %p143 = scmp.eq.s32.totalorder %s18, 0
      %p144 = por %p142, %p143
      %p145 = scmp.ne.s32.totalorder %s133, %s134
      %p146 = scmp.eq.s32.totalorder %s19, 1
      %p147 = por %p145, %p146
      %p149 = scmp.ne.s32.totalorder %s134, %s148
      %p150 = scmp.eq.s32.totalorder %s19, 0
      %p151 = por %p149, %p150
      %s153 = sadd.s32 %s152, 1
      %p156 = scmp.eq.s32.totalorder %s13, 1
      %p157 = scmp.ne.s32.totalorder %s152, %s154
      %p158 = scmp.eq.s32.totalorder %s13, 0
      %p159 = por %p157, %p158
      %p160 = scmp.ne.s32.totalorder %s152, %s154
      %p161 = scmp.eq.s32.totalorder %s18, 1
      %p162 = por %p160, %p161
      %p163 = scmp.ne.s32.totalorder %s154, %s155
      %p164 = scmp.eq.s32.totalorder %s18, 0
      %p165 = por %p163, %p164
      %p166 = scmp.ne.s32.totalorder %s154, %s155
      %p167 = scmp.eq.s32.totalorder %s19, 1
      %p168 = por %p166, %p167
      %p170 = scmp.ne.s32.totalorder %s155, %s169
      %p171 = scmp.eq.s32.totalorder %s19, 0
      %p172 = por %p170, %p171
      %s173 = ssub.s32 %s13, %s20
      %p174 = scmp.eq.s32.totalorder %s173, 0
      %s176 = sadd.s32 %s175, 1
      %s177 = scalar_select %p174, %s175, %s176
      %p180 = pneg %p174
      %p181 = scmp.eq.s32.totalorder %s13, 1
      %p182 = por %p180, %p181
      %p183 = scmp.ne.s32.totalorder %s175, %s178
      %p184 = scmp.eq.s32.totalorder %s13, 0
      %p185 = por %p183, %p184
      %p186 = scmp.ne.s32.totalorder %s175, %s178
      %p187 = scmp.eq.s32.totalorder %s18, 1
      %p188 = por %p186, %p187
      %p189 = scmp.ne.s32.totalorder %s178, %s179
      %p190 = scmp.eq.s32.totalorder %s18, 0
      %p191 = por %p189, %p190
      %p192 = scmp.ne.s32.totalorder %s178, %s179
      %p193 = scmp.eq.s32.totalorder %s19, 1
      %p194 = por %p192, %p193
      %p196 = scmp.ne.s32.totalorder %s179, %s195
      %p197 = scmp.eq.s32.totalorder %s19, 0
      %p198 = por %p196, %p197
      %p199 = scmp.le.s32.totalorder 1, %s13
      %p200 = scmp.lt.s32.totalorder %s13, 3
      %p201 = pnand %p199, %p200
      %p202 = pneg %p201
      // Predicated region
      $region9: #{topology_net_forward.1} parent=5 // pred_check
        _
      $region10: #{topology_net_forward.1} parent=5 // pred_check_branch
        %204 = sbr.rel (%p201) target = $region12
      $region11: #{topology_net_forward.1} parent=5 // pred_region
        %s205 = ssub.s32 %s13, 1
        // Predicated region
        $region13: #{topology_net_forward.1} parent=11 // pred_check
          %p206 = pneg %p60
        $region14: #{topology_net_forward.1} parent=11 // pred_check_branch
          %208 = sbr.rel (%p206) target = $region16
        $region15: #{topology_net_forward.1} parent=11 // pred_region
          _
        $region16: #{topology_net_forward.1} parent=11 // pred_fallthru
          _
        // Predicated region
        $region17: #{topology_net_forward.1} parent=11 // pred_check
          %p209 = pneg %p81
        $region18: #{topology_net_forward.1} parent=11 // pred_check_branch
          %211 = sbr.rel (%p209) target = $region20
        $region19: #{topology_net_forward.1} parent=11 // pred_region
          _
        $region20: #{topology_net_forward.1} parent=11 // pred_fallthru
          _
        // Predicated region
        $region21: #{topology_net_forward.1} parent=11 // pred_check
          %p212 = pneg %p102
        $region22: #{topology_net_forward.1} parent=11 // pred_check_branch
          %214 = sbr.rel (%p212) target = $region24
        $region23: #{topology_net_forward.1} parent=11 // pred_region
          _
        $region24: #{topology_net_forward.1} parent=11 // pred_fallthru
          _
        // Predicated region
        $region25: #{topology_net_forward.1} parent=11 // pred_check
          %p215 = pneg %p123
        $region26: #{topology_net_forward.1} parent=11 // pred_check_branch
          %217 = sbr.rel (%p215) target = $region28
        $region27: #{topology_net_forward.1} parent=11 // pred_region
          _
        $region28: #{topology_net_forward.1} parent=11 // pred_fallthru
          _
        // Predicated region
        $region29: #{topology_net_forward.1} parent=11 // pred_check
          %p218 = pneg %p144
        $region30: #{topology_net_forward.1} parent=11 // pred_check_branch
          %220 = sbr.rel (%p218) target = $region32
        $region31: #{topology_net_forward.1} parent=11 // pred_region
          _
        $region32: #{topology_net_forward.1} parent=11 // pred_fallthru
          _
        // Predicated region
        $region33: #{topology_net_forward.1} parent=11 // pred_check
          %p221 = pneg %p165
        $region34: #{topology_net_forward.1} parent=11 // pred_check_branch
          %223 = sbr.rel (%p221) target = $region36
        $region35: #{topology_net_forward.1} parent=11 // pred_region
          _
        $region36: #{topology_net_forward.1} parent=11 // pred_fallthru
          _
      $region12: #{topology_net_forward.1} parent=5 // pred_fallthru
        _
      %p224 = scmp.lt.s32.totalorder %s13, 2
      // Predicated region
      $region37: #{topology_net_forward.1} parent=5 // pred_check
        %p225 = pneg %p224
      $region38: #{topology_net_forward.1} parent=5 // pred_check_branch
        %227 = sbr.rel (%p225) target = $region40
      $region39: #{topology_net_forward.1} parent=5 // pred_region
        // Predicated region
        $region41: #{topology_net_forward.1} parent=39 // pred_check
          %p228 = pneg %p33
        $region42: #{topology_net_forward.1} parent=39 // pred_check_branch
          %230 = sbr.rel (%p228) target = $region44
        $region43: #{topology_net_forward.1} parent=39 // pred_region
          %s231 = smul.u32 2, %s13
          %p232 = scmp.lt.s32.totalorder %s231, 3
          %s233 = scalar_select %p232, %s231, 3
          %s234 = smul.addr %s233, 2
          %s235 = scalar_lea.vmem %s0, %s234
          %s236 = smul.u32 2, %s13
        $region44: #{topology_net_forward.1} parent=39 // pred_fallthru
          _
      $region40: #{topology_net_forward.1} parent=5 // pred_fallthru
        _
      %p237 = scmp.le.s32.totalorder 1, %s13
      %p238 = scmp.lt.s32.totalorder %s13, 3
      %p239 = pnand %p237, %p238
      %p240 = pneg %p239
      // Predicated region
      $region45: #{topology_net_forward.1} parent=5 // pred_check
        _
      $region46: #{topology_net_forward.1} parent=5 // pred_check_branch
        %242 = sbr.rel (%p239) target = $region48
      $region47: #{topology_net_forward.1} parent=5 // pred_region
        %s243 = ssub.s32 %s13, 1
        %s244 = smul.u32 2, %s18
        %p245 = scmp.lt.s32.totalorder %s244, 3
        %s246 = scalar_select %p245, %s244, 3
        %s247 = smul.addr %s246, 2
        %s248 = scalar_lea.vmem %s0, %s247
        %p249 = pneg %p39
        %p250 = pneg %p36
        %p251 = pneg %p60
        %p252 = pneg %p57
        %p253 = pneg %p81
        %p254 = pneg %p78
        %p255 = pneg %p102
        %p256 = pneg %p99
        %p257 = pneg %p123
        %p258 = pneg %p120
        %p259 = pneg %p144
        %p260 = pneg %p141
        %p261 = pneg %p165
        %p262 = pneg %p162
        %p263 = pneg %p191
        %p264 = pneg %p188
        %s265 = sand.u32 %s178, 1
        %s266 = sand.u32 %s178, 1
        %s267 = smul.addr %s266, 32
        %s268 = scalar_lea.vmem [#allocation2], %s267
        %s269 = smul.u32 2, %s18
        %p270 = scmp.lt.s32.totalorder %s269, 3
        %s271 = scalar_select %p270, %s269, 3
        %s272 = smul.addr %s271, 2
        %s273 = scalar_lea.vmem %s0, %s272
        %s274 = smul.u32 2, %s18
        %s275 = smul.u32 2, %s18
        %v276 = vld [vmem:[%s273] sm:$0xf]
        %v279 = vunpack.c.l.s4 1983009808
        %v280 = vunpack.c.0.s8 %v279
        %v281 = vlaneseq
        %v282 = vshrl.u32 %v281, 7
        %v283 = vsub.s32 %v280, %v282
        %v284 = vrot.slane %v276, %v283
        %v285 = vcombine.high %v284, %v284
        %286 = vrot.lane.b32.xlu0 %v284, 127
        %v287 = vpop.permute.xlu0 %286
        %288 = vrot.lane.b32.xlu0 %v285, 127
        %v289 = vpop.permute.xlu0 %288
        %vm290 = vcmask 1039360
        %v291 = vsel %vm290, %v287, %v289
        %v293 = vsel %vm290, %v289, 0.0
        %294 = vrot.lane.b32.xlu0 %v284, 126
        %v295 = vpop.permute.xlu0 %294
        %296 = vrot.lane.b32.xlu0 %v285, 126
        %v297 = vpop.permute.xlu0 %296
        %vm298 = vcmask 1031168
        %v299 = vsel %vm298, %v295, %v297
        %v301 = vsel %vm298, %v297, 0.0
        %302 = vrot.lane.b32.xlu0 %v284, 112
        %v303 = vpop.permute.xlu0 %302
        %304 = vrot.lane.b32.xlu0 %v285, 112
        %v305 = vpop.permute.xlu0 %304
        %vm306 = vcmask 916480
        %v307 = vsel %vm306, %v303, %v305
        %v309 = vsel %vm306, %v305, 0.0
        %310 = vrot.lane.b32.xlu0 %v284, 111
        %v311 = vpop.permute.xlu0 %310
        %312 = vrot.lane.b32.xlu0 %v285, 111
        %v313 = vpop.permute.xlu0 %312
        %vm314 = vcmask 908288
        %v315 = vsel %vm314, %v311, %v313
        %v318 = vsel %vm314, %v313, 0.0
        %319 = vrot.lane.b32.xlu0 %v284, 110
        %v320 = vpop.permute.xlu0 %319
        %321 = vrot.lane.b32.xlu0 %v285, 110
        %v322 = vpop.permute.xlu0 %321
        %vm323 = vcmask 900096
        %v324 = vsel %vm323, %v320, %v322
        %v326 = vsel %vm323, %v322, 0.0
        %327 = vrot.lane.b32.xlu0 %v284, 96
        %v328 = vpop.permute.xlu0 %327
        %329 = vrot.lane.b32.xlu0 %v285, 96
        %v330 = vpop.permute.xlu0 %329
        %vm331 = vcmask 785408
        %v332 = vsel %vm331, %v328, %v330
        %v334 = vsel %vm331, %v330, 0.0
        %335 = vrot.lane.b32.xlu0 %v284, 95
        %v336 = vpop.permute.xlu0 %335
        %337 = vrot.lane.b32.xlu0 %v285, 95
        %v338 = vpop.permute.xlu0 %337
        %vm339 = vcmask 777216
        %v340 = vsel %vm339, %v336, %v338
        %v342 = vsel %vm339, %v338, 0.0
        %343 = vrot.lane.b32.xlu0 %v284, 94
        %v344 = vpop.permute.xlu0 %343
        %345 = vrot.lane.b32.xlu0 %v285, 94
        %v346 = vpop.permute.xlu0 %345
        %vm347 = vcmask 769024
        %v348 = vsel %vm347, %v344, %v346
        %v350 = vsel %vm347, %v346, 0.0
        %v354 = vrot.slane %v291, 6
        %v355 = vrot.slane %v293, 6
        %v359 = vrot.slane %v299, 4
        %v360 = vrot.slane %v301, 4
        %v364 = vrot.slane %v307, 2
        %v365 = vrot.slane %v309, 2
        %v369 = vrot.slane %v324, 6
        %v370 = vrot.slane %v326, 6
        %v374 = vrot.slane %v332, 4
        %v375 = vrot.slane %v334, 4
        %v379 = vrot.slane %v340, 2
        %v380 = vrot.slane %v342, 2
        %vm383 = vcmask 1041408
        %v384 = vsel %vm383, %v284, %v354
        %v385 = vsel %vm383, %v285, %v355
        %vm386 = vcmask 1043456
        %v387 = vsel %vm386, %v384, %v359
        %v388 = vsel %vm386, %v385, %v360
        %vm389 = vcmask 1045504
        %v390 = vsel %vm389, %v387, %v364
        %v391 = vsel %vm389, %v388, %v365
        %v392 = vsel %vm383, %v315, %v369
        %v393 = vsel %vm383, %v318, %v370
        %v394 = vsel %vm386, %v392, %v374
        %v395 = vsel %vm386, %v393, %v375
        %v396 = vsel %vm389, %v394, %v379
        %v397 = vsel %vm389, %v395, %v380
        %v398 = vld [vmem:[%s1] sm:$0xf]
        %vm399 = vcmask 146432
        %v401 = vsel %vm399, %v398, 0
        %v403 = vsel %vm383, %v348, 0
        %v406 = vsel %vm383, %v350, 0
        %408 = vmatprep.subr.mxu0 %v391
        %409 = vmatpush1.msra.mxu0 %v390
        %410 = vmatprep.subr.mxu0 %v397
        %411 = vmatpush1.msra.mxu0 %v396
        %412 = vmatprep.subr.mxu0 %v406
        %413 = vmatpush1.msra.mxu0 %v403
        %414 = vmatprep.subr.mxu0 0.0
        %415 = vmatpush1.msra.mxu0 0.0
        %416 = vmatprep.subr.mxu0 0.0
        %417 = vmatpush1.msra.mxu0 0.0
        %418 = vmatprep.subr.mxu0 0.0
        %419 = vmatpush1.msra.mxu0 0.0
        %420 = vmatprep.subr.mxu0 0.0
        %421 = vmatpush1.msra.mxu0 0.0
        %422 = vmatprep.subr.mxu0 0.0
        %423 = vmatpush1.msra.mxu0 0.0
        %424 = vmatprep.subr.mxu0 0.0
        %425 = vmatpush1.msra.mxu0 0.0
        %426 = vmatprep.subr.mxu0 0.0
        %427 = vmatpush1.msra.mxu0 0.0
        %428 = vmatprep.subr.mxu0 0.0
        %429 = vmatpush1.msra.mxu0 0.0
        %430 = vmatprep.subr.mxu0 0.0
        %431 = vmatpush1.msra.mxu0 0.0
        %432 = vmatprep.subr.mxu0 0.0
        %433 = vmatpush1.msra.mxu0 0.0
        %434 = vmatprep.subr.mxu0 0.0
        %435 = vmatpush1.msra.mxu0 0.0
        %436 = vmatprep.subr.mxu0 0.0
        %437 = vmatpush1.msra.mxu0 0.0
        %438 = vmatprep.subr.mxu0 0.0
        %439 = vmatpush1.msra.mxu0 0.0
        %440 = vmatprep.subr.mxu0 0.0
        %441 = vmatpush1.msra.mxu0 0.0
        %442 = vmatprep.subr.mxu0 0.0
        %443 = vmatpush1.msra.mxu0 0.0
        %444 = vmatprep.subr.mxu0 0.0
        %445 = vmatpush1.msra.mxu0 0.0
        %446 = vmatprep.subr.mxu0 0.0
        %447 = vmatpush1.msra.mxu0 0.0
        %448 = vmatprep.subr.mxu0 0.0
        %449 = vmatpush1.msra.mxu0 0.0
        %450 = vmatprep.subr.mxu0 0.0
        %451 = vmatpush1.msra.mxu0 0.0
        %452 = vmatprep.subr.mxu0 0.0
        %453 = vmatpush1.msra.mxu0 0.0
        %454 = vmatprep.subr.mxu0 0.0
        %455 = vmatpush1.msra.mxu0 0.0
        %456 = vmatprep.subr.mxu0 0.0
        %457 = vmatpush1.msra.mxu0 0.0
        %458 = vmatprep.subr.mxu0 0.0
        %459 = vmatpush1.msra.mxu0 0.0
        %460 = vmatprep.subr.mxu0 0.0
        %461 = vmatpush1.msra.mxu0 0.0
        %462 = vmatprep.subr.mxu0 0.0
        %463 = vmatpush1.msra.mxu0 0.0
        %464 = vmatprep.subr.mxu0 0.0
        %465 = vmatpush1.msra.mxu0 0.0
        %466 = vmatprep.subr.mxu0 0.0
        %467 = vmatpush1.msra.mxu0 0.0
        %468 = vmatprep.subr.mxu0 0.0
        %469 = vmatpush1.msra.mxu0 0.0
        %470 = vmatprep.subr.mxu0 0.0
        %471 = vmatpush1.msra.mxu0 0.0
        %472 = vmatprep.mubr.f32.mxu0 0.0
        %473 = vmatmul.mubr.f32.gmra.mrb[0].mxu0 %v401
        %v474 = vpop.f32.mrb[0].mxu0
        %v475 = vadd.f32 0.0, %v474
        %v476 = vpop.f32.mrb[0].mxu0
        %v477 = vadd.f32 0.0, %v476
        %478 = vdwg.mxu0
        %481 = vrot.lane.b32.xlu0 %v475, 127
        %v482 = vpop.permute.xlu0 %481
        %483 = vrot.lane.b32.xlu0 %v477, 127
        %v484 = vpop.permute.xlu0 %483
        %v485 = vsel %vm290, %v482, %v484
        %v488 = vsel %vm290, %v484, 0.0
        %489 = vrot.lane.b32.xlu0 %v475, 112
        %v490 = vpop.permute.xlu0 %489
        %491 = vrot.lane.b32.xlu0 %v477, 112
        %v492 = vpop.permute.xlu0 %491
        %v493 = vsel %vm306, %v490, %v492
        %v496 = vsel %vm306, %v492, 0.0
        %497 = vrot.lane.b32.xlu0 %v475, 111
        %v498 = vpop.permute.xlu0 %497
        %499 = vrot.lane.b32.xlu0 %v477, 111
        %v500 = vpop.permute.xlu0 %499
        %v501 = vsel %vm314, %v498, %v500
        %v504 = vsel %vm314, %v500, 0.0
        %v505 = vmax.f32 %v475, %v485
        %v506 = vmax.f32 %v477, %v488
        %v507 = vmax.f32 %v505, %v493
        %v508 = vmax.f32 %v506, %v496
        %v509 = vmax.f32 %v507, %v501
        %v510 = vmax.f32 %v508, %v504
        %v511 = vld [vmem:[%s2] sm:$0xf]
        %513 = vset.pattern.permute.xlu0 0
        %514 = vperm.xlu0 %513, %v511
        %v515 = vpop.permute.xlu0 %514
        %v517 = vadd.f32 %v509, %v515
        %v518 = vadd.f32 %v510, %v515
        %vm519 = vcmp.gt.f32.partialorder %v517, 1.0
        %vm520 = vcmp.gt.f32.partialorder %v518, 1.0
        %v521 = vsel %vm519, 1, 0
        %v522 = vsel %vm520, 1, 0
        %v523 = vcvt.s32.f32 %v521
        %v524 = vcvt.s32.f32 %v522
        %527 = vrot.lane.b32.xlu0 %v523, 126
        %v528 = vpop.permute.xlu0 %527
        %529 = vrot.lane.b32.xlu0 %v524, 126
        %v530 = vpop.permute.xlu0 %529
        %v531 = vsel %vm298, %v528, %v530
        %v533 = vsel %vm298, %v530, 0.0
        %534 = vrot.lane.b32.xlu0 %v523, 124
        %v535 = vpop.permute.xlu0 %534
        %536 = vrot.lane.b32.xlu0 %v524, 124
        %v537 = vpop.permute.xlu0 %536
        %vm538 = vcmask 1014784
        %v539 = vsel %vm538, %v535, %v537
        %v542 = vsel %vm538, %v537, 0.0
        %543 = vrot.lane.b32.xlu0 %v523, 96
        %v544 = vpop.permute.xlu0 %543
        %545 = vrot.lane.b32.xlu0 %v524, 96
        %v546 = vpop.permute.xlu0 %545
        %v547 = vsel %vm331, %v544, %v546
        %v549 = vsel %vm331, %v546, 0.0
        %550 = vrot.lane.b32.xlu0 %v523, 94
        %v551 = vpop.permute.xlu0 %550
        %552 = vrot.lane.b32.xlu0 %v524, 94
        %v553 = vpop.permute.xlu0 %552
        %v554 = vsel %vm347, %v551, %v553
        %v557 = vsel %vm347, %v553, 0.0
        %558 = vrot.lane.b32.xlu0 %v523, 92
        %v559 = vpop.permute.xlu0 %558
        %560 = vrot.lane.b32.xlu0 %v524, 92
        %v561 = vpop.permute.xlu0 %560
        %vm562 = vcmask 752640
        %v563 = vsel %vm562, %v559, %v561
        %v565 = vsel %vm562, %v561, 0.0
        %566 = vrot.lane.b32.xlu0 %v523, 64
        %v567 = vpop.permute.xlu0 %566
        %568 = vrot.lane.b32.xlu0 %v524, 64
        %v569 = vpop.permute.xlu0 %568
        %vm570 = vcmask 523264
        %v571 = vsel %vm570, %v567, %v569
        %v574 = vsel %vm570, %v569, 0.0
        %575 = vrot.lane.b32.xlu0 %v523, 62
        %v576 = vpop.permute.xlu0 %575
        %577 = vrot.lane.b32.xlu0 %v524, 62
        %v578 = vpop.permute.xlu0 %577
        %vm579 = vcmask 506880
        %v580 = vsel %vm579, %v576, %v578
        %v582 = vsel %vm579, %v578, 0.0
        %583 = vrot.lane.b32.xlu0 %v523, 60
        %v584 = vpop.permute.xlu0 %583
        %585 = vrot.lane.b32.xlu0 %v524, 60
        %v586 = vpop.permute.xlu0 %585
        %vm587 = vcmask 490496
        %v588 = vsel %vm587, %v584, %v586
        %v590 = vsel %vm587, %v586, 0.0
        %v592 = vrot.slane %v531, 4
        %v593 = vrot.slane %v533, 4
        %v597 = vrot.slane %v547, 4
        %v598 = vrot.slane %v549, 4
        %v602 = vrot.slane %v563, 4
        %v603 = vrot.slane %v565, 4
        %v607 = vrot.slane %v580, 4
        %v608 = vrot.slane %v582, 4
        %v611 = vsel %vm386, %v523, %v592
        %v612 = vsel %vm386, %v524, %v593
        %v613 = vsel %vm386, %v539, %v597
        %v614 = vsel %vm386, %v542, %v598
        %v615 = vsel %vm386, %v554, %v602
        %v616 = vsel %vm386, %v557, %v603
        %v617 = vsel %vm386, %v571, %v607
        %v618 = vsel %vm386, %v574, %v608
        %v619 = vld [vmem:[%s3] sm:$0xff]
        %vm620 = vcmask 293888
        %v622 = vsel %vm620, %v619, 0
        %v624 = vsel %vm386, %v588, 0
        %v627 = vsel %vm386, %v590, 0
        %629 = vmatprep.subr.mxu0 %v612
        %630 = vmatpush1.msra.mxu0 %v611
        %631 = vmatprep.subr.mxu0 %v614
        %632 = vmatpush1.msra.mxu0 %v613
        %633 = vmatprep.subr.mxu0 %v616
        %634 = vmatpush1.msra.mxu0 %v615
        %635 = vmatprep.subr.mxu0 %v618
        %636 = vmatpush1.msra.mxu0 %v617
        %637 = vmatprep.subr.mxu0 %v627
        %638 = vmatpush1.msra.mxu0 %v624
        %639 = vmatprep.subr.mxu0 0.0
        %640 = vmatpush1.msra.mxu0 0.0
        %641 = vmatprep.subr.mxu0 0.0
        %642 = vmatpush1.msra.mxu0 0.0
        %643 = vmatprep.subr.mxu0 0.0
        %644 = vmatpush1.msra.mxu0 0.0
        %645 = vmatprep.subr.mxu0 0.0
        %646 = vmatpush1.msra.mxu0 0.0
        %647 = vmatprep.subr.mxu0 0.0
        %648 = vmatpush1.msra.mxu0 0.0
        %649 = vmatprep.subr.mxu0 0.0
        %650 = vmatpush1.msra.mxu0 0.0
        %651 = vmatprep.subr.mxu0 0.0
        %652 = vmatpush1.msra.mxu0 0.0
        %653 = vmatprep.subr.mxu0 0.0
        %654 = vmatpush1.msra.mxu0 0.0
        %655 = vmatprep.subr.mxu0 0.0
        %656 = vmatpush1.msra.mxu0 0.0
        %657 = vmatprep.subr.mxu0 0.0
        %658 = vmatpush1.msra.mxu0 0.0
        %659 = vmatprep.subr.mxu0 0.0
        %660 = vmatpush1.msra.mxu0 0.0
        %661 = vmatprep.subr.mxu0 0.0
        %662 = vmatpush1.msra.mxu0 0.0
        %663 = vmatprep.subr.mxu0 0.0
        %664 = vmatpush1.msra.mxu0 0.0
        %665 = vmatprep.subr.mxu0 0.0
        %666 = vmatpush1.msra.mxu0 0.0
        %667 = vmatprep.subr.mxu0 0.0
        %668 = vmatpush1.msra.mxu0 0.0
        %669 = vmatprep.subr.mxu0 0.0
        %670 = vmatpush1.msra.mxu0 0.0
        %671 = vmatprep.subr.mxu0 0.0
        %672 = vmatpush1.msra.mxu0 0.0
        %673 = vmatprep.subr.mxu0 0.0
        %674 = vmatpush1.msra.mxu0 0.0
        %675 = vmatprep.subr.mxu0 0.0
        %676 = vmatpush1.msra.mxu0 0.0
        %677 = vmatprep.subr.mxu0 0.0
        %678 = vmatpush1.msra.mxu0 0.0
        %679 = vmatprep.subr.mxu0 0.0
        %680 = vmatpush1.msra.mxu0 0.0
        %681 = vmatprep.subr.mxu0 0.0
        %682 = vmatpush1.msra.mxu0 0.0
        %683 = vmatprep.subr.mxu0 0.0
        %684 = vmatpush1.msra.mxu0 0.0
        %685 = vmatprep.subr.mxu0 0.0
        %686 = vmatpush1.msra.mxu0 0.0
        %687 = vmatprep.subr.mxu0 0.0
        %688 = vmatpush1.msra.mxu0 0.0
        %689 = vmatprep.subr.mxu0 0.0
        %690 = vmatpush1.msra.mxu0 0.0
        %691 = vmatprep.subr.mxu0 0.0
        %692 = vmatpush1.msra.mxu0 0.0
        %693 = vmatprep.mubr.f32.mxu0 0.0
        %694 = vmatmul.mubr.f32.gmra.mrb[0].mxu0 %v622
        %v695 = vpop.f32.mrb[0].mxu0
        %v696 = vadd.f32 0.0, %v695
        %v697 = vpop.f32.mrb[0].mxu0
        %v698 = vadd.f32 0.0, %v697
        %699 = vdwg.mxu0
        %702 = vrot.lane.b32.xlu0 %v696, 126
        %v703 = vpop.permute.xlu0 %702
        %704 = vrot.lane.b32.xlu0 %v698, 126
        %v705 = vpop.permute.xlu0 %704
        %v706 = vsel %vm298, %v703, %v705
        %v709 = vsel %vm298, %v705, 0.0
        %710 = vrot.lane.b32.xlu0 %v696, 96
        %v711 = vpop.permute.xlu0 %710
        %712 = vrot.lane.b32.xlu0 %v698, 96
        %v713 = vpop.permute.xlu0 %712
        %v714 = vsel %vm331, %v711, %v713
        %v717 = vsel %vm331, %v713, 0.0
        %718 = vrot.lane.b32.xlu0 %v696, 94
        %v719 = vpop.permute.xlu0 %718
        %720 = vrot.lane.b32.xlu0 %v698, 94
        %v721 = vpop.permute.xlu0 %720
        %v722 = vsel %vm347, %v719, %v721
        %v725 = vsel %vm347, %v721, 0.0
        %v726 = vmax.f32 %v696, %v706
        %v727 = vmax.f32 %v698, %v709
        %v728 = vmax.f32 %v726, %v714
        %v729 = vmax.f32 %v727, %v717
        %v730 = vmax.f32 %v728, %v722
        %v731 = vmax.f32 %v729, %v725
        %v732 = vld [vmem:[%s4] sm:$0xff]
        %734 = vset.pattern.permute.xlu0 0
        %735 = vperm.xlu0 %734, %v732
        %v736 = vpop.permute.xlu0 %735
        %v738 = vadd.f32 %v730, %v736
        %v739 = vadd.f32 %v731, %v736
        %vm740 = vcmp.gt.f32.partialorder %v738, 1.0
        %vm741 = vcmp.gt.f32.partialorder %v739, 1.0
        %v742 = vsel %vm740, 1, 0
        %v743 = vsel %vm741, 1, 0
        %v744 = vcvt.s32.f32 %v742
        %v745 = vcvt.s32.f32 %v743
        %748 = vrot.lane.b32.xlu0 %v744, 124
        %v749 = vpop.permute.xlu0 %748
        %750 = vrot.lane.b32.xlu0 %v745, 124
        %v751 = vpop.permute.xlu0 %750
        %v752 = vsel %vm538, %v749, %v751
        %v755 = vsel %vm538, %v751, 0.0
        %756 = vrot.lane.b32.xlu0 %v744, 64
        %v757 = vpop.permute.xlu0 %756
        %758 = vrot.lane.b32.xlu0 %v745, 64
        %v759 = vpop.permute.xlu0 %758
        %v760 = vsel %vm570, %v757, %v759
        %v763 = vsel %vm570, %v759, 0.0
        %764 = vrot.lane.b32.xlu0 %v744, 60
        %v765 = vpop.permute.xlu0 %764
        %766 = vrot.lane.b32.xlu0 %v745, 60
        %v767 = vpop.permute.xlu0 %766
        %v768 = vsel %vm587, %v765, %v767
        %v771 = vsel %vm587, %v767, 0.0
        %v772 = vld [vmem:[%s5] sm:$0xff]
        %v773 = vld [vmem:[%s5 + $0x8] sm:$0xff]
        %v774 = vld [vmem:[%s6] sm:$0xff]
        %v775 = vld [vmem:[%s6 + $0x8] sm:$0xff]
        %777 = vset.pattern.permute.xlu0 0
        %778 = vperm.xlu0 %777, %v774
        %v779 = vpop.permute.xlu0 %778
        %782 = vset.pattern.permute.xlu0 0
        %783 = vperm.xlu0 %782, %v775
        %v784 = vpop.permute.xlu0 %783
        %vm786 = vcmask 261120
        %v788 = vsel %vm786, %v772, 0
        %v791 = vsel %vm786, %v773, 0
        %793 = vmatprep.subr.mxu0 %v745
        %794 = vmatpush1.msra.mxu0 %v744
        %795 = vmatprep.subr.mxu0 %v755
        %796 = vmatpush1.msra.mxu0 %v752
        %797 = vmatprep.subr.mxu0 %v763
        %798 = vmatpush1.msra.mxu0 %v760
        %799 = vmatprep.subr.mxu0 %v771
        %800 = vmatpush1.msra.mxu0 %v768
        %801 = vmatprep.subr.mxu0 0.0
        %802 = vmatpush1.msra.mxu0 0.0
        %803 = vmatprep.subr.mxu0 0.0
        %804 = vmatpush1.msra.mxu0 0.0
        %805 = vmatprep.subr.mxu0 0.0
        %806 = vmatpush1.msra.mxu0 0.0
        %807 = vmatprep.subr.mxu0 0.0
        %808 = vmatpush1.msra.mxu0 0.0
        %809 = vmatprep.subr.mxu0 0.0
        %810 = vmatpush1.msra.mxu0 0.0
        %811 = vmatprep.subr.mxu0 0.0
        %812 = vmatpush1.msra.mxu0 0.0
        %813 = vmatprep.subr.mxu0 0.0
        %814 = vmatpush1.msra.mxu0 0.0
        %815 = vmatprep.subr.mxu0 0.0
        %816 = vmatpush1.msra.mxu0 0.0
        %817 = vmatprep.subr.mxu0 0.0
        %818 = vmatpush1.msra.mxu0 0.0
        %819 = vmatprep.subr.mxu0 0.0
        %820 = vmatpush1.msra.mxu0 0.0
        %821 = vmatprep.subr.mxu0 0.0
        %822 = vmatpush1.msra.mxu0 0.0
        %823 = vmatprep.subr.mxu0 0.0
        %824 = vmatpush1.msra.mxu0 0.0
        %825 = vmatprep.subr.mxu0 0.0
        %826 = vmatpush1.msra.mxu0 0.0
        %827 = vmatprep.subr.mxu0 0.0
        %828 = vmatpush1.msra.mxu0 0.0
        %829 = vmatprep.subr.mxu0 0.0
        %830 = vmatpush1.msra.mxu0 0.0
        %831 = vmatprep.subr.mxu0 0.0
        %832 = vmatpush1.msra.mxu0 0.0
        %833 = vmatprep.subr.mxu0 0.0
        %834 = vmatpush1.msra.mxu0 0.0
        %835 = vmatprep.subr.mxu0 0.0
        %836 = vmatpush1.msra.mxu0 0.0
        %837 = vmatprep.subr.mxu0 0.0
        %838 = vmatpush1.msra.mxu0 0.0
        %839 = vmatprep.subr.mxu0 0.0
        %840 = vmatpush1.msra.mxu0 0.0
        %841 = vmatprep.subr.mxu0 0.0
        %842 = vmatpush1.msra.mxu0 0.0
        %843 = vmatprep.subr.mxu0 0.0
        %844 = vmatpush1.msra.mxu0 0.0
        %845 = vmatprep.subr.mxu0 0.0
        %846 = vmatpush1.msra.mxu0 0.0
        %847 = vmatprep.subr.mxu0 0.0
        %848 = vmatpush1.msra.mxu0 0.0
        %849 = vmatprep.subr.mxu0 0.0
        %850 = vmatpush1.msra.mxu0 0.0
        %851 = vmatprep.subr.mxu0 0.0
        %852 = vmatpush1.msra.mxu0 0.0
        %853 = vmatprep.subr.mxu0 0.0
        %854 = vmatpush1.msra.mxu0 0.0
        %855 = vmatprep.subr.mxu0 0.0
        %856 = vmatpush1.msra.mxu0 0.0
        %857 = vmatprep.mubr.f32.mxu0 0.0
        %858 = vmatmul.mubr.f32.gmra.mrb[0].mxu0 %v788
        %v859 = vpop.f32.mrb[0].mxu0
        %v860 = vadd.f32 %v779, %v859
        %v861 = vpop.f32.mrb[0].mxu0
        %v862 = vadd.f32 %v779, %v861
        %863 = vmatprep.mubr.f32.mxu0 0.0
        %864 = vmatmul.mubr.f32.gmra.mrb[0].mxu0 %v791
        %v865 = vpop.f32.mrb[0].mxu0
        %v866 = vadd.f32 %v784, %v865
        %v867 = vpop.f32.mrb[0].mxu0
        %v868 = vadd.f32 %v784, %v867
        %869 = vdwg.mxu0
        %870 = vst [vmem:[%s268] sm:$0xff] %v860
        %871 = vst [vmem:[%s268 + $0x8] sm:$0xff] %v862
        %872 = vst [vmem:[%s268 + $0x10] sm:$0xff] %v866
        %873 = vst [vmem:[%s268 + $0x18] sm:$0xff] %v868
        %s874 = sand.u32 %s178, 1
        %s875 = sand.u32 %s178, 1
        %s876 = smul.addr %s875, 32
        %s877 = scalar_lea.vmem [#allocation2], %s876
        // Predicated region
        $region49: #{topology_net_forward.1} parent=47 // pred_check
          %p878 = pneg %p188
        $region50: #{topology_net_forward.1} parent=47 // pred_check_branch
          %880 = sbr.rel (%p878) target = $region52
        $region51: #{topology_net_forward.1} parent=47 // pred_region
          %s881 = smul.u32 2, %s18
          %s882 = smul.addr %s881, 8
          %s883 = scalar_lea.vmem %s7, %s882
          // Predicated region
          $region53: #{topology_net_forward.1} parent=51 // pred_check
            _
          $region54: #{topology_net_forward.1} parent=51 // pred_check_branch
            %885 = sbr.rel (0) target = $region56
          $region55: #{topology_net_forward.1} parent=51 // pred_region
            // Predicated region
            $region57: #{topology_net_forward.1} parent=55 // pred_check
              _
            $region58: #{topology_net_forward.1} parent=55 // pred_check_branch
              %887 = sbr.rel (0) target = $region60
            $region59: #{topology_net_forward.1} parent=55 // pred_region
              loop: start=0, step=1, limit=1
              $region61: #{topology_net_forward.1} parent=59 // loop_pre_header
                _
              $region62: #{topology_net_forward.1} parent=59 // loop_header
                %s889 = sphi 0, %s893
                %p890 = scmp.ge.s32.totalorder %s889, 1
                %s894 = sphi %s877, %s877
                %s895 = sphi %s883, %s883
              $region63: #{topology_net_forward.1} parent=59 // loop_header_branch
                %892 = sbr.rel (%p890) target = $region67
              $region64: #{topology_net_forward.1} parent=59 // loop_body
                %v896 = vld [vmem:[%s894] sm:$0xff]
                %897 = vst [vmem:[%s895] sm:$0xff] %v896
                %v898 = vld [vmem:[%s894 + $0x8] sm:$0xff]
                %899 = vst [vmem:[%s895 + $0x8] sm:$0xff] %v898
                %v900 = vld [vmem:[%s894 + $0x10] sm:$0xff]
                %901 = vst [vmem:[%s895 + $0x20] sm:$0xff] %v900
                %v902 = vld [vmem:[%s894 + $0x18] sm:$0xff]
                %903 = vst [vmem:[%s895 + $0x28] sm:$0xff] %v902
              $region65: #{topology_net_forward.1} parent=59 // loop_footer
                %s893 = sadd.s32 1, %s889
              $region66: #{topology_net_forward.1} parent=59 // loop_footer_branch
                %888 = sbr.rel target = $region62
              $region67: #{topology_net_forward.1} parent=59 // loop_exit
                _
            $region60: #{topology_net_forward.1} parent=55 // pred_fallthru
              _
            // Predicated region
            $region68: #{topology_net_forward.1} parent=55 // pred_check
              _
            $region69: #{topology_net_forward.1} parent=55 // pred_check_branch
              %905 = sbr.rel target = $region71
            $region70: #{topology_net_forward.1} parent=55 // pred_region
              _
            $region71: #{topology_net_forward.1} parent=55 // pred_fallthru
              _
          $region56: #{topology_net_forward.1} parent=51 // pred_fallthru
            _
          %906 = vnop
        $region52: #{topology_net_forward.1} parent=47 // pred_fallthru
          _
      $region48: #{topology_net_forward.1} parent=5 // pred_fallthru
        _
      %p907 = scmp.le.s32.totalorder 2, %s13
      // Predicated region
      $region72: #{topology_net_forward.1} parent=5 // pred_check
        %p908 = pneg %p907
      $region73: #{topology_net_forward.1} parent=5 // pred_check_branch
        %910 = sbr.rel (%p908) target = $region75
      $region74: #{topology_net_forward.1} parent=5 // pred_region
        %s911 = ssub.s32 %s13, 2
        // Predicated region
        $region76: #{topology_net_forward.1} parent=74 // pred_check
          %p912 = pneg %p194
        $region77: #{topology_net_forward.1} parent=74 // pred_check_branch
          %914 = sbr.rel (%p912) target = $region79
        $region78: #{topology_net_forward.1} parent=74 // pred_region
          %s915 = sand.u32 %s179, 1
          %s916 = sand.u32 %s179, 1
          %s917 = smul.addr %s916, 32
          %s918 = scalar_lea.vmem [#allocation2], %s917
        $region79: #{topology_net_forward.1} parent=74 // pred_fallthru
          _
      $region75: #{topology_net_forward.1} parent=5 // pred_fallthru
        _
    $region6: #{topology_net_forward.1} parent=1 // loop_footer
      %s17 = sadd.s32 1, %s13
    $region7: #{topology_net_forward.1} parent=1 // loop_footer_branch
      %12 = sbr.rel target = $region3
    $region8: #{topology_net_forward.1} parent=1 // loop_exit
      _

</llo_original>
